<compile_context>
chip_gen: v5e
topology: v5e:2x2
jax: 0.10.0
libtpu: 0.0.40
codegen_flags: <defaults>
</compile_context>

<pallas_src>
import functools

import jax
import jax.numpy as jnp
from jax import lax
from jax.experimental import pallas as pl
from jax.experimental.pallas import tpu as pltpu


def _round_up(x: int, m: int) -> int:
    return ((x + m - 1) // m) * m


def text_sentiment_kernel(text_ref, starts_ref, ends_ref, emb_hi_ref,
                          emb_lo_ref, w_ref, b_ref, out_ref, pooled_acc):
    j = pl.program_id(1)                # vocab-chunk (reduction) axis
    num_chunks = pl.num_programs(1)
    tb = out_ref.shape[0]               # bags handled by this grid step
    t_pad = text_ref.shape[0]           # padded total token count
    v_chunk = emb_hi_ref.shape[0]       # vocab rows in this chunk

    @pl.when(j == 0)
    def _init():
        pooled_acc[...] = jnp.zeros_like(pooled_acc)

    # --- one-hot token matrix for this vocab chunk: exact 0/1 in bf16 -------
    tok = text_ref[...]                                          # (T, 1) i32
    v_ids = j * v_chunk + lax.broadcasted_iota(jnp.int32, (t_pad, v_chunk), 1)
    onehot = (tok == v_ids).astype(jnp.float32).astype(jnp.bfloat16)  # (T, Vc)

    # --- 0/1 bag-membership matrix (TB, T): token t belongs to bag b --------
    starts = starts_ref[...]                                     # (TB, 1)
    ends = ends_ref[...]                                         # (TB, 1)
    tpos = lax.broadcasted_iota(jnp.int32, (tb, t_pad), 1)
    in_bag = (tpos >= starts) & (tpos < ends)
    seg = in_bag.astype(jnp.float32).astype(jnp.bfloat16)        # (TB, T)

    # counts[b, v] = #occurrences of token id (j*Vc + v) in bag b.
    # Exact with 0/1 bf16 operands + f32 accumulation -> single MXU pass.
    counts = jnp.dot(seg, onehot, preferred_element_type=jnp.float32)

    # Embedding-sum accumulation. emb = emb_hi + emb_lo (bf16 split of the
    # f32 table); counts are small exact integers, so two single-pass bf16
    # matmuls recover ~f32 accuracy at a third of HIGHEST's MXU passes.
    counts_bf = counts.astype(jnp.bfloat16)
    pooled_acc[...] += (
        jnp.dot(counts_bf, emb_hi_ref[...], preferred_element_type=jnp.float32)
        + jnp.dot(counts_bf, emb_lo_ref[...], preferred_element_type=jnp.float32))

    @pl.when(j == num_chunks - 1)
    def _finalize():
        # EmbeddingBag 'mean': cheap VPU row scale (empty bags stay zero).
        bag_len = (ends - starts).astype(jnp.float32)            # (TB, 1)
        inv_len = pl.reciprocal(jnp.maximum(bag_len, 1.0), approx=False)
        pooled = pooled_acc[...] * inv_len                       # (TB, D)
        # FC is the smallest matmul (D x num_class); keep it f32-exact.
        # (Mosaic dot lowering supports DEFAULT/HIGHEST precisions.)
        logits = jnp.dot(pooled, w_ref[...],
                         preferred_element_type=jnp.float32,
                         precision=lax.Precision.HIGHEST)
        out_ref[...] = (logits + b_ref[...]).astype(out_ref.dtype)


@functools.partial(jax.jit, static_argnames=("bag_tile", "vocab_chunk"))
def text_sentiment_forward(text, offsets, emb_table, fc_w, fc_b, *,
                           bag_tile=None, vocab_chunk=None):
    """EmbeddingBag(mean) + Linear forward.

    text:      (T,)   int token ids (all bags concatenated)
    offsets:   (B,)   int bag start offsets into `text` (sorted ascending)
    emb_table: (V, D) embedding weight (float32)
    fc_w:      (D, C) nn.Linear weight transposed (out = x @ fc_w + fc_b)
    fc_b:      (C,) or (1, C) nn.Linear bias
    Returns (B, C) float32 logits.
    """
    total_tokens = text.shape[0]
    num_bags = offsets.shape[0]
    vocab, embed_dim = emb_table.shape
    num_class = fc_w.shape[1]

    if bag_tile is None:
        # Fill MXU rows / engage both v7x TensorCores for big batches, while
        # tiny batches only pad to the sublane minimum of 8.
        bag_tile = min(_round_up(max(num_bags, 1), 8), 256)
    if vocab_chunk is None:
        # Bounds the (T, Vc)/(TB, Vc) intermediates and the resident embedding
        # block independent of vocabulary size (VMEM/vreg safety).
        vocab_chunk = min(_round_up(vocab, 8), 512)

    t_pad = _round_up(max(total_tokens, 1), 8)
    b_pad = _round_up(max(num_bags, 1), bag_tile)
    v_pad = _round_up(vocab, vocab_chunk)
    c_pad = _round_up(num_class, 128)

    # Token column; padded slots never fall inside a real bag, so are ignored.
    text_col = jnp.zeros((t_pad, 1), jnp.int32).at[:total_tokens, 0].set(
        text.astype(jnp.int32))

    offsets = offsets.astype(jnp.int32)
    ends = jnp.concatenate([offsets[1:], jnp.array([total_tokens], jnp.int32)])
    starts_col = jnp.zeros((b_pad, 1), jnp.int32).at[:num_bags, 0].set(offsets)
    ends_col = jnp.zeros((b_pad, 1), jnp.int32).at[:num_bags, 0].set(ends)

    # bf16 hi/lo split of the f32 table: emb ≈ hi + lo (same bytes as f32,
    # enables single-pass bf16 MXU matmuls with ~f32 accuracy).
    emb_f32 = emb_table.astype(jnp.float32)
    emb_hi = emb_f32.astype(jnp.bfloat16)
    emb_lo = (emb_f32 - emb_hi.astype(jnp.float32)).astype(jnp.bfloat16)
    emb_hi_p = jnp.zeros((v_pad, embed_dim), jnp.bfloat16).at[:vocab].set(emb_hi)
    emb_lo_p = jnp.zeros((v_pad, embed_dim), jnp.bfloat16).at[:vocab].set(emb_lo)

    # Lane-dense FC params (C -> multiple of 128); extra columns are zero and
    # sliced off after the call.
    fc_b = jnp.reshape(fc_b, (1, num_class)).astype(jnp.float32)
    fc_w_p = jnp.zeros((embed_dim, c_pad), jnp.float32).at[:, :num_class].set(
        fc_w.astype(jnp.float32))
    fc_b_p = jnp.zeros((1, c_pad), jnp.float32).at[:, :num_class].set(fc_b)

    grid = (b_pad // bag_tile, v_pad // vocab_chunk)
    out = pl.pallas_call(
        text_sentiment_kernel,
        out_shape=jax.ShapeDtypeStruct((b_pad, c_pad), jnp.float32),
        grid=grid,
        in_specs=[
            pl.BlockSpec((t_pad, 1), lambda i, j: (0, 0)),              # tokens
            pl.BlockSpec((bag_tile, 1), lambda i, j: (i, 0)),           # starts
            pl.BlockSpec((bag_tile, 1), lambda i, j: (i, 0)),           # ends
            pl.BlockSpec((vocab_chunk, embed_dim), lambda i, j: (j, 0)),  # emb hi
            pl.BlockSpec((vocab_chunk, embed_dim), lambda i, j: (j, 0)),  # emb lo
            pl.BlockSpec((embed_dim, c_pad), lambda i, j: (0, 0)),      # fc W
            pl.BlockSpec((1, c_pad), lambda i, j: (0, 0)),              # fc b
        ],
        out_specs=pl.BlockSpec((bag_tile, c_pad), lambda i, j: (i, 0)),
        scratch_shapes=[pltpu.VMEM((bag_tile, embed_dim), jnp.float32)],
        compiler_params=pltpu.CompilerParams(
            # Bag tiles are independent (shardable across v7x TensorCores);
            # the vocab axis is a reduction into the VMEM accumulator.
            dimension_semantics=("parallel", "arbitrary"),
        ),
    )(text_col, starts_col, ends_col, emb_hi_p, emb_lo_p, fc_w_p, fc_b_p)

    return out[:num_bags, :num_class]


def ref_forward_numpy(text, offsets, emb_table, fc_w, fc_b):
    """Exact float64 numpy reference of EmbeddingBag(mean) + Linear."""
    import numpy as np
    text = np.asarray(text)
    offs = np.asarray(offsets)
    emb = np.asarray(emb_table, dtype=np.float64)
    w = np.asarray(fc_w, dtype=np.float64)
    b = np.asarray(fc_b, dtype=np.float64).reshape(1, -1)
    total = text.shape[0]
    ends = np.concatenate([offs[1:], np.array([total])])
    pooled = np.zeros((offs.shape[0], emb.shape[1]), dtype=np.float64)
    for i, (s, e) in enumerate(zip(offs, ends)):
        if e > s:
            pooled[i] = emb[text[s:e]].mean(axis=0)
    return pooled @ w + b


if __name__ == "__main__":
    import numpy as np

    # ---- Test 1: small shapes implied by the module, default tiling --------
    vocab_size, embed_dim, num_class = 32, 32, 4
    num_bags, total_tokens = 2, 8
    initrange = 1.5

    key = jax.random.PRNGKey(0)
    k_emb, k_w, k_tok = jax.random.split(key, 3)

    # Parameter init mirrors TextSentiment.init_weights():
    #   embedding.weight ~ U(-1.5, 1.5), fc.weight ~ U(-1.5, 1.5), fc.bias = 0
    emb_table = jax.random.uniform(
        k_emb, (vocab_size, embed_dim), jnp.float32, -initrange, initrange)
    fc_weight = jax.random.uniform(
        k_w, (num_class, embed_dim), jnp.float32, -initrange, initrange)
    fc_w = fc_weight.T                      # (D, C) so out = x @ fc_w + fc_b
    fc_b = jnp.zeros((num_class,), jnp.float32)

    text = jax.random.randint(k_tok, (total_tokens,), 0, vocab_size, jnp.int32)
    offsets = jnp.array([0, 5], dtype=jnp.int32)   # bag0: [0:5], bag1: [5:8]

    out = text_sentiment_forward(text, offsets, emb_table, fc_w, fc_b)
    out = jax.block_until_ready(out)
    expected = ref_forward_numpy(text, offsets, emb_table, fc_w, fc_b)
    assert out.shape == (num_bags, num_class), out.shape
    assert np.allclose(np.asarray(out), expected, atol=5e-4, rtol=5e-4), (
        np.asarray(out), expected)

    # ---- Test 2: exercises both grid axes (2 bag tiles x 4 vocab chunks),
    #      includes an empty bag and a nonzero bias ---------------------------
    vocab2, embed2, classes2 = 64, 32, 4
    lens2 = np.array([4, 3, 5, 0, 6, 4, 3, 4, 3, 5], dtype=np.int32)
    tokens2 = int(lens2.sum())                       # 37
    offs2 = np.concatenate([[0], np.cumsum(lens2)[:-1]]).astype(np.int32)

    k2_emb, k2_w, k2_b, k2_tok = jax.random.split(jax.random.PRNGKey(1), 4)
    emb2 = jax.random.uniform(k2_emb, (vocab2, embed2), jnp.float32, -1.5, 1.5)
    w2 = jax.random.uniform(k2_w, (classes2, embed2), jnp.float32, -1.5, 1.5).T
    b2 = jax.random.uniform(k2_b, (classes2,), jnp.float32, -0.5, 0.5)
    text2 = jax.random.randint(k2_tok, (tokens2,), 0, vocab2, jnp.int32)

    out2 = text_sentiment_forward(text2, jnp.asarray(offs2), emb2, w2, b2,
                                  bag_tile=8, vocab_chunk=16)
    out2 = jax.block_until_ready(out2)
    expected2 = ref_forward_numpy(text2, offs2, emb2, w2, b2)
    assert out2.shape == (lens2.shape[0], classes2), out2.shape
    assert np.allclose(np.asarray(out2), expected2, atol=5e-4, rtol=5e-4), (
        np.asarray(out2), expected2)

    print("KERNEL_OK")
</pallas_src>

<mosaic_0001>
module attributes {stable_mosaic.version = 11 : i64} {
  func.func @text_sentiment_kernel(%arg0: i32, %arg1: i32, %arg2: memref<8x1xi32, #tpu.memory_space<vmem>>, %arg3: memref<8x1xi32, #tpu.memory_space<vmem>>, %arg4: memref<8x1xi32, #tpu.memory_space<vmem>>, %arg5: memref<32x32xbf16, #tpu.memory_space<vmem>>, %arg6: memref<32x32xbf16, #tpu.memory_space<vmem>>, %arg7: memref<32x128xf32, #tpu.memory_space<vmem>>, %arg8: memref<1x128xf32, #tpu.memory_space<vmem>>, %arg9: memref<8x128xf32, #tpu.memory_space<vmem>>, %arg10: memref<8x32xf32, #tpu.memory_space<vmem>>) attributes {dimension_semantics = [#tpu.dimension_semantics<parallel>, #tpu.dimension_semantics<arbitrary>], iteration_bounds = array<i64: 1, 1>, scalar_prefetch = 0 : i64, scratch_operands = 1 : i64, tpu.core_type = #tpu.core_type<tc>, window_params = [{pipeline_mode = #tpu.pipeline_mode<synchronous>, transform_indices = @transform_0, window_bounds = array<i64: 8, 1>}, {transform_indices = @transform_1, window_bounds = array<i64: 8, 1>}, {transform_indices = @transform_2, window_bounds = array<i64: 8, 1>}, {transform_indices = @transform_3, window_bounds = array<i64: 32, 32>}, {transform_indices = @transform_4, window_bounds = array<i64: 32, 32>}, {pipeline_mode = #tpu.pipeline_mode<synchronous>, transform_indices = @transform_5, window_bounds = array<i64: 32, 128>}, {pipeline_mode = #tpu.pipeline_mode<synchronous>, transform_indices = @transform_6, window_bounds = array<i64: 1, 128>}, {transform_indices = @transform_7, window_bounds = array<i64: 8, 128>}]} {
    %c0_i32 = arith.constant 0 : i32
    %0 = arith.cmpi eq, %arg1, %c0_i32 : i32
    %1 = arith.extui %0 : i1 to i32
    %c0_i32_0 = arith.constant 0 : i32
    %2 = arith.cmpi ne, %1, %c0_i32_0 : i32
    scf.if %2 {
      %cst_18 = arith.constant 0.000000e+00 : f32
      %37 = vector.broadcast %cst_18 : f32 to vector<8x32xf32>
      %c0_19 = arith.constant 0 : index
      %c0_20 = arith.constant 0 : index
      %38 = vector.load %arg10[%c0_19, %c0_20] : memref<8x32xf32, #tpu.memory_space<vmem>>, vector<8x32xf32>
      tpu.vector_store %arg10[%c0_19, %c0_20], %37 {strides = array<i32>} : memref<8x32xf32, #tpu.memory_space<vmem>>, vector<8x32xf32>,
    } else {
    }
    %c0 = arith.constant 0 : index
    %c0_1 = arith.constant 0 : index
    %3 = vector.load %arg2[%c0, %c0_1] : memref<8x1xi32, #tpu.memory_space<vmem>>, vector<8x1xi32>
    %c32_i32 = arith.constant 32 : i32
    %4 = arith.muli %arg1, %c32_i32 : i32
    %5 = tpu.iota {dimensions = array<i32: 1>} : vector<8x32xi32>
    %6 = vector.broadcast %4 : i32 to vector<8x32xi32>
    %7 = arith.addi %6, %5 : vector<8x32xi32>
    %8 = vector.broadcast %3 : vector<8x1xi32> to vector<8x32xi32>
    %9 = arith.cmpi eq, %8, %7 : vector<8x32xi32>
    %10 = arith.extui %9 : vector<8x32xi1> to vector<8x32xi32>
    %11 = arith.sitofp %10 : vector<8x32xi32> to vector<8x32xf32>
    %12 = arith.truncf %11 : vector<8x32xf32> to vector<8x32xbf16>
    %c0_2 = arith.constant 0 : index
    %c0_3 = arith.constant 0 : index
    %13 = vector.load %arg3[%c0_2, %c0_3] : memref<8x1xi32, #tpu.memory_space<vmem>>, vector<8x1xi32>
    %c0_4 = arith.constant 0 : index
    %c0_5 = arith.constant 0 : index
    %14 = vector.load %arg4[%c0_4, %c0_5] : memref<8x1xi32, #tpu.memory_space<vmem>>, vector<8x1xi32>
    %15 = tpu.iota {dimensions = array<i32: 1>} : vector<8x8xi32>
    %16 = vector.broadcast %13 : vector<8x1xi32> to vector<8x8xi32>
    %17 = arith.cmpi sge, %15, %16 : vector<8x8xi32>
    %18 = vector.broadcast %14 : vector<8x1xi32> to vector<8x8xi32>
    %19 = arith.cmpi slt, %15, %18 : vector<8x8xi32>
    %20 = arith.andi %17, %19 : vector<8x8xi1>
    %21 = arith.extui %20 : vector<8x8xi1> to vector<8x8xi32>
    %22 = arith.sitofp %21 : vector<8x8xi32> to vector<8x8xf32>
    %23 = arith.truncf %22 : vector<8x8xf32> to vector<8x8xbf16>
    %cst = arith.constant dense<0.000000e+00> : vector<8x32xf32>
    %24 = tpu.matmul %23, %12, %cst {dimension_numbers = #tpu.dot_dimension_numbers<[1], [0], [0], [1], [0, 0, 1, 1], [], []>} : vector<8x8xbf16>, vector<8x32xbf16>, vector<8x32xf32> -> vector<8x32xf32>
    %25 = arith.truncf %24 : vector<8x32xf32> to vector<8x32xbf16>
    %c0_6 = arith.constant 0 : index
    %c0_7 = arith.constant 0 : index
    %26 = vector.load %arg10[%c0_6, %c0_7] : memref<8x32xf32, #tpu.memory_space<vmem>>, vector<8x32xf32>
    %c0_8 = arith.constant 0 : index
    %c0_9 = arith.constant 0 : index
    %27 = vector.load %arg5[%c0_8, %c0_9] : memref<32x32xbf16, #tpu.memory_space<vmem>>, vector<32x32xbf16>
    %cst_10 = arith.constant dense<0.000000e+00> : vector<8x32xf32>
    %28 = tpu.matmul %25, %27, %cst_10 {dimension_numbers = #tpu.dot_dimension_numbers<[1], [0], [0], [1], [0, 0, 1, 1], [], []>} : vector<8x32xbf16>, vector<32x32xbf16>, vector<8x32xf32> -> vector<8x32xf32>
    %c0_11 = arith.constant 0 : index
    %c0_12 = arith.constant 0 : index
    %29 = vector.load %arg6[%c0_11, %c0_12] : memref<32x32xbf16, #tpu.memory_space<vmem>>, vector<32x32xbf16>
    %cst_13 = arith.constant dense<0.000000e+00> : vector<8x32xf32>
    %30 = tpu.matmul %25, %29, %cst_13 {dimension_numbers = #tpu.dot_dimension_numbers<[1], [0], [0], [1], [0, 0, 1, 1], [], []>} : vector<8x32xbf16>, vector<32x32xbf16>, vector<8x32xf32> -> vector<8x32xf32>
    %31 = arith.addf %28, %30 : vector<8x32xf32>
    %32 = arith.addf %26, %31 : vector<8x32xf32>
    %c0_14 = arith.constant 0 : index
    %c0_15 = arith.constant 0 : index
    %33 = vector.load %arg10[%c0_14, %c0_15] : memref<8x32xf32, #tpu.memory_space<vmem>>, vector<8x32xf32>
    tpu.vector_store %arg10[%c0_14, %c0_15], %32 {strides = array<i32>} : memref<8x32xf32, #tpu.memory_space<vmem>>, vector<8x32xf32>,
    %c0_i32_16 = arith.constant 0 : i32
    %34 = arith.cmpi eq, %arg1, %c0_i32_16 : i32
    %35 = arith.extui %34 : i1 to i32
    %c0_i32_17 = arith.constant 0 : i32
    %36 = arith.cmpi ne, %35, %c0_i32_17 : i32
    scf.if %36 {
      %37 = arith.subi %14, %13 : vector<8x1xi32>
      %38 = arith.sitofp %37 : vector<8x1xi32> to vector<8x1xf32>
      %cst_18 = arith.constant 1.000000e+00 : f32
      %39 = vector.broadcast %cst_18 : f32 to vector<8x1xf32>
      %40 = arith.maximumf %38, %39 : vector<8x1xf32>
      %41 = tpu.reciprocal %40 : vector<8x1xf32> -> vector<8x1xf32>
      %c0_19 = arith.constant 0 : index
      %c0_20 = arith.constant 0 : index
      %42 = vector.load %arg10[%c0_19, %c0_20] : memref<8x32xf32, #tpu.memory_space<vmem>>, vector<8x32xf32>
      %43 = vector.broadcast %41 : vector<8x1xf32> to vector<8x32xf32>
      %44 = arith.mulf %42, %43 : vector<8x32xf32>
      %c0_21 = arith.constant 0 : index
      %c0_22 = arith.constant 0 : index
      %45 = vector.load %arg7[%c0_21, %c0_22] : memref<32x128xf32, #tpu.memory_space<vmem>>, vector<32x128xf32>
      %cst_23 = arith.constant dense<0.000000e+00> : vector<8x128xf32>
      %46 = tpu.matmul %44, %45, %cst_23 {dimension_numbers = #tpu.dot_dimension_numbers<[1], [0], [0], [1], [0, 0, 1, 1], [], []>, precision = #tpu.contract_precision<fp32>} : vector<8x32xf32>, vector<32x128xf32>, vector<8x128xf32> -> vector<8x128xf32>
      %c0_24 = arith.constant 0 : index
      %c0_25 = arith.constant 0 : index
      %47 = vector.load %arg8[%c0_24, %c0_25] : memref<1x128xf32, #tpu.memory_space<vmem>>, vector<1x128xf32>
      %48 = vector.broadcast %47 : vector<1x128xf32> to vector<8x128xf32>
      %49 = arith.addf %46, %48 : vector<8x128xf32>
      %c0_26 = arith.constant 0 : index
      %c0_27 = arith.constant 0 : index
      %50 = vector.load %arg9[%c0_26, %c0_27] : memref<8x128xf32, #tpu.memory_space<vmem>>, vector<8x128xf32>
      tpu.vector_store %arg9[%c0_26, %c0_27], %49 {strides = array<i32>} : memref<8x128xf32, #tpu.memory_space<vmem>>, vector<8x128xf32>,
    } else {
    }
    return
  }
  func.func @transform_0(%arg0: i32, %arg1: i32) -> (i32, i32) {
    %c0_i32 = arith.constant 0 : i32
    %c0_i32_0 = arith.constant 0 : i32
    %c0_i32_1 = arith.constant 0 : i32
    return %c0_i32, %c0_i32_0 : i32, i32
  }
  func.func @transform_1(%arg0: i32, %arg1: i32) -> (i32, i32) {
    %c0_i32 = arith.constant 0 : i32
    %c0_i32_0 = arith.constant 0 : i32
    return %arg0, %c0_i32 : i32, i32
  }
  func.func @transform_2(%arg0: i32, %arg1: i32) -> (i32, i32) {
    %c0_i32 = arith.constant 0 : i32
    %c0_i32_0 = arith.constant 0 : i32
    return %arg0, %c0_i32 : i32, i32
  }
  func.func @transform_3(%arg0: i32, %arg1: i32) -> (i32, i32) {
    %c0_i32 = arith.constant 0 : i32
    %c0_i32_0 = arith.constant 0 : i32
    return %arg1, %c0_i32 : i32, i32
  }
  func.func @transform_4(%arg0: i32, %arg1: i32) -> (i32, i32) {
    %c0_i32 = arith.constant 0 : i32
    %c0_i32_0 = arith.constant 0 : i32
    return %arg1, %c0_i32 : i32, i32
  }
  func.func @transform_5(%arg0: i32, %arg1: i32) -> (i32, i32) {
    %c0_i32 = arith.constant 0 : i32
    %c0_i32_0 = arith.constant 0 : i32
    %c0_i32_1 = arith.constant 0 : i32
    return %c0_i32, %c0_i32_0 : i32, i32
  }
  func.func @transform_6(%arg0: i32, %arg1: i32) -> (i32, i32) {
    %c0_i32 = arith.constant 0 : i32
    %c0_i32_0 = arith.constant 0 : i32
    %c0_i32_1 = arith.constant 0 : i32
    return %c0_i32, %c0_i32_0 : i32, i32
  }
  func.func @transform_7(%arg0: i32, %arg1: i32) -> (i32, i32) {
    %c0_i32 = arith.constant 0 : i32
    %c0_i32_0 = arith.constant 0 : i32
    return %arg0, %c0_i32 : i32, i32
  }
}

</mosaic_0001>

<llo_original>
// kernel: text_sentiment_forward.1
$region0: #{text_sentiment_forward.1}
  #allocation0 [shape = 'u32[]', space=smem, size = 0x4, offset = 0x4, fixed_abs, tag = 'smem constant byte address 0x4 - core index']
  #allocation1 [shape = 'u32[72,128]{1,0:T(1,128)}', space=vmem, size = 0x9000, scoped, tag = 'internal scratch']
  #allocation2 [shape = 'f32[8,32]{1,0:T(8,128)}', space=vmem, size = 0x1000, scoped, tag = 'scratch operand']
  %s0 = inlined_call_operand.vmem [shape: s32[8,1], index: 0, kind: input, shape index: {}]
  %s1 = inlined_call_operand.vmem [shape: s32[8,1], index: 1, kind: input, shape index: {}]
  %s2 = inlined_call_operand.vmem [shape: s32[8,1], index: 2, kind: input, shape index: {}]
  %s3 = inlined_call_operand.vmem [shape: bf16[32,32], index: 3, kind: input, shape index: {}]
  %s4 = inlined_call_operand.vmem [shape: bf16[32,32], index: 4, kind: input, shape index: {}]
  %s5 = inlined_call_operand.vmem [shape: f32[32,128], index: 5, kind: input, shape index: {}]
  %s6 = inlined_call_operand.vmem [shape: f32[1,128], index: 6, kind: input, shape index: {}]
  %s7 = inlined_call_operand.vmem [shape: f32[8,128], index: 7, kind: output, shape index: {}]
  %s8 = sld [smem:[#allocation0]]
  $region46: #{text_sentiment_forward.1} parent=0
    _
  %s10 = ssub.s32 1, %s8
  %s11 = scalar_select 0, %s10, %s8
  // Predicated region
  $region2: #{text_sentiment_forward.1} parent=0 // pred_check
    _
  $region3: #{text_sentiment_forward.1} parent=0 // pred_check_branch
    %13 = sbr.rel (0) target = $region5
  $region4: #{text_sentiment_forward.1} parent=0 // pred_region
    _
  $region5: #{text_sentiment_forward.1} parent=0 // pred_fallthru
    _
  // Predicated region
  $region6: #{text_sentiment_forward.1} parent=0 // pred_check
    _
  $region7: #{text_sentiment_forward.1} parent=0 // pred_check_branch
    %15 = sbr.rel (0) target = $region9
  $region8: #{text_sentiment_forward.1} parent=0 // pred_region
    _
  $region9: #{text_sentiment_forward.1} parent=0 // pred_fallthru
    _
  // Predicated region
  $region10: #{text_sentiment_forward.1} parent=0 // pred_check
    _
  $region11: #{text_sentiment_forward.1} parent=0 // pred_check_branch
    %17 = sbr.rel (0) target = $region13
  $region12: #{text_sentiment_forward.1} parent=0 // pred_region
    _
  $region13: #{text_sentiment_forward.1} parent=0 // pred_fallthru
    _
  // Predicated region
  $region14: #{text_sentiment_forward.1} parent=0 // pred_check
    _
  $region15: #{text_sentiment_forward.1} parent=0 // pred_check_branch
    %19 = sbr.rel (0) target = $region17
  $region16: #{text_sentiment_forward.1} parent=0 // pred_region
    _
  $region17: #{text_sentiment_forward.1} parent=0 // pred_fallthru
    _
  // Predicated region
  $region18: #{text_sentiment_forward.1} parent=0 // pred_check
    _
  $region19: #{text_sentiment_forward.1} parent=0 // pred_check_branch
    %21 = sbr.rel (0) target = $region21
  $region20: #{text_sentiment_forward.1} parent=0 // pred_region
    _
  $region21: #{text_sentiment_forward.1} parent=0 // pred_fallthru
    _
  // Predicated region
  $region22: #{text_sentiment_forward.1} parent=0 // pred_check
    _
  $region23: #{text_sentiment_forward.1} parent=0 // pred_check_branch
    %23 = sbr.rel (0) target = $region25
  $region24: #{text_sentiment_forward.1} parent=0 // pred_region
    _
  $region25: #{text_sentiment_forward.1} parent=0 // pred_fallthru
    _
  // Predicated region
  $region26: #{text_sentiment_forward.1} parent=0 // pred_check
    _
  $region27: #{text_sentiment_forward.1} parent=0 // pred_check_branch
    %25 = sbr.rel (0) target = $region29
  $region28: #{text_sentiment_forward.1} parent=0 // pred_region
    _
  $region29: #{text_sentiment_forward.1} parent=0 // pred_fallthru
    _
  %p27 = scmp.eq.s32.totalorder 0, 0
  // Predicated region
  $region30: #{text_sentiment_forward.1} parent=0 // pred_check
    %p28 = pneg %p27
  $region31: #{text_sentiment_forward.1} parent=0 // pred_check_branch
    %30 = sbr.rel (%p28) target = $region33
  $region32: #{text_sentiment_forward.1} parent=0 // pred_region
    %vm31 = vcmask 261120
    %32 = vst.msk [vmem:[#allocation2] sm:$0xff] %vm31, 0.0
  $region33: #{text_sentiment_forward.1} parent=0 // pred_fallthru
    _
  %v33 = vld [vmem:[%s0] sm:$0xff]
  %s34 = smul.u32 0, 32
  %v35 = vlaneseq
  %v36 = vand.u32 %v35, 127
  %v37 = vstv %s34
  %v38 = vadd.s32 %v37, %v36
  %39 = vset.pattern.permute.xlu0 0
  %40 = vperm.xlu0 %39, %v33
  %v41 = vpop.permute.xlu0 %40
  %vm42 = vcmp.eq.s32.totalorder %v41, %v38
  %v43 = vsel %vm42, 1, 0
  %v44 = vcvt.s32.f32 %v43
  %v45 = vpack.c.bf16 %v44, %v44
  %v46 = vld [vmem:[%s1] sm:$0xff]
  %v47 = vld [vmem:[%s2] sm:$0xff]
  %48 = vset.pattern.permute.xlu0 0
  %49 = vperm.xlu0 %48, %v46
  %v50 = vpop.permute.xlu0 %49
  %vm51 = vcmp.ge.s32.totalorder %v36, %v50
  %52 = vset.pattern.permute.xlu0 0
  %53 = vperm.xlu0 %52, %v47
  %v54 = vpop.permute.xlu0 %53
  %vm55 = vcmp.lt.s32.totalorder %v36, %v54
  %vm56 = vmand %vm51, %vm55
  %v57 = vsel %vm56, 1, 0
  %v58 = vcvt.s32.f32 %v57
  %v59 = vpack.c.bf16 %v58, %v58
  %vm60 = vcmask 64512
  %v62 = vsel %vm60, %v59, 0
  %vm64 = vcmask 1043456
  %v66 = vsel %vm64, %v45, 0
  %68 = vmatpush.bf16.msra.mxu0 0
  %69 = vmatpush.bf16.msra.mxu0 0
  %70 = vmatpush.bf16.msra.mxu0 0
  %71 = vmatpush.bf16.msra.mxu0 0
  %72 = vmatpush.bf16.msra.mxu0 0
  %73 = vmatpush.bf16.msra.mxu0 0
  %74 = vmatpush.bf16.msra.mxu0 0
  %75 = vmatpush.bf16.msra.mxu0 %v66
  %76 = vmatmul.bf16.gmra.mxu0 %v62
  %v77 = vpop.f32.mrf.mxu0
  %v78 = vadd.f32 0.0, %v77
  %v79 = vpop.f32.mrf.mxu0
  %80 = vdwg.mxu0
  %v81 = vpack.c.bf16 %v78, %v78
  %v82 = vld [vmem:[#allocation2] sm:$0xff]
  %v83 = vld [vmem:[%s3] sm:$0xf]
  %v84 = vld [vmem:[%s3 + $0x4] sm:$0xf]
  %v85 = vld [vmem:[%s3 + $0x8] sm:$0xf]
  %v86 = vld [vmem:[%s3 + $0xc] sm:$0xf]
  %v87 = vld [vmem:[%s4] sm:$0xf]
  %v88 = vld [vmem:[%s4 + $0x4] sm:$0xf]
  %v89 = vld [vmem:[%s4 + $0x8] sm:$0xf]
  %v90 = vld [vmem:[%s4 + $0xc] sm:$0xf]
  %v95 = vunpack.c.l.b16 %v87
  %v96 = vunpack.c.l.b16 %v88
  %v97 = vunpack.c.l.b16 %v89
  %v98 = vunpack.c.l.b16 %v90
  %v99 = vpack.c.b16 %v96, %v95
  %v100 = vpack.c.b16 %v98, %v97
  %vm103 = vcmask 261120
  %v105 = vsel %vm103, %v81, 0
  %107 = vmatpush.bf16.msra.mxu0 0
  %108 = vmatpush.bf16.msra.mxu0 0
  %109 = vmatpush.bf16.msra.mxu0 0
  %110 = vmatpush.bf16.msra.mxu0 0
  %111 = vmatpush.bf16.msra.mxu0 0
  %112 = vmatpush.bf16.msra.mxu0 0
  %113 = vmatpush.bf16.msra.mxu0 %v100
  %114 = vmatpush.bf16.msra.mxu0 %v99
  %115 = vmatmul.bf16.gmra.mxu0 %v105
  %v116 = vpop.f32.mrf.mxu0
  %v117 = vadd.f32 0.0, %v116
  %v118 = vpop.f32.mrf.mxu0
  %119 = vdwg.mxu0
  %v124 = vunpack.c.l.b16 %v83
  %v125 = vunpack.c.l.b16 %v84
  %v126 = vunpack.c.l.b16 %v85
  %v127 = vunpack.c.l.b16 %v86
  %v128 = vpack.c.b16 %v125, %v124
  %v129 = vpack.c.b16 %v127, %v126
  %132 = vmatpush.bf16.msra.mxu0 0
  %133 = vmatpush.bf16.msra.mxu0 0
  %134 = vmatpush.bf16.msra.mxu0 0
  %135 = vmatpush.bf16.msra.mxu0 0
  %136 = vmatpush.bf16.msra.mxu0 0
  %137 = vmatpush.bf16.msra.mxu0 0
  %138 = vmatpush.bf16.msra.mxu0 %v129
  %139 = vmatpush.bf16.msra.mxu0 %v128
  %140 = vmatmul.bf16.gmra.mxu0 %v105
  %v141 = vpop.f32.mrf.mxu0
  %v142 = vadd.f32 %v117, %v141
  %v143 = vpop.f32.mrf.mxu0
  %144 = vdwg.mxu0
  %v145 = vadd.f32 %v82, %v142
  %146 = vst.msk [vmem:[#allocation2] sm:$0xff] %vm103, %v145
  // Predicated region
  $region34: #{text_sentiment_forward.1} parent=0 // pred_check
    %p147 = pneg %p27
  $region35: #{text_sentiment_forward.1} parent=0 // pred_check_branch
    %149 = sbr.rel (%p147) target = $region37
  $region36: #{text_sentiment_forward.1} parent=0 // pred_region
    %v150 = vsub.s32 %v47, %v46
    %v151 = vcvt.s32.f32 %v150
    %v152 = vmax.f32 %v151, 1.0
    %v153 = vrcp.pop %v152
    %v154 = vmul.f32 %v152, %v153
    %v155 = vsub.f32 1.0, %v154
    %v156 = vmul.f32 %v153, %v155
    %v157 = vadd.f32 %v153, %v156
    %vm158 = vweird.f32 %v152
    %vm159 = vweird.f32 %v153
    %vm160 = vmor %vm158, %vm159
    %v161 = vsel %vm160, %v153, %v157
    %v162 = vand.u32 2147483647, %v152
    %vm163 = vcmp.eq.f32.partialorder %v162, 8.507059e+37
    %v164 = vand.u32 %v152, 2147483648
    %v165 = vor.u32 1.1754944e-38, %v164
    %v166 = vsel %vm163, %v165, %v161
    %v167 = vld [vmem:[#allocation2] sm:$0xff]
    %169 = vset.pattern.permute.xlu0 0
    %170 = vperm.xlu0 %169, %v166
    %v171 = vpop.permute.xlu0 %170
    %v173 = vmul.f32 %v167, %v171
    %v174 = vld [vmem:[%s5] sm:$0xff]
    %v175 = vld [vmem:[%s5 + $0x8] sm:$0xff]
    %v176 = vld [vmem:[%s5 + $0x10] sm:$0xff]
    %v177 = vld [vmem:[%s5 + $0x18] sm:$0xff]
    %v178 = vld [vmem:[%s6] sm:$0x1]
    %v180 = vperm.slane %v178, 0
    %v183 = vsel %vm103, %v173, 0
    %185 = vmatpush.msra.mxu0 0.0
    %186 = vmatpush.msra.mxu0 0.0
    %187 = vmatpush.msra.mxu0 0.0
    %188 = vmatpush.msra.mxu0 0.0
    %189 = vmatpush.msra.mxu0 0.0
    %190 = vmatpush.msra.mxu0 0.0
    %191 = vmatpush.msra.mxu0 0.0
    %192 = vmatpush.msra.mxu0 0.0
    %193 = vmatpush.msra.mxu0 0.0
    %194 = vmatpush.msra.mxu0 0.0
    %195 = vmatpush.msra.mxu0 0.0
    %196 = vmatpush.msra.mxu0 0.0
    %v197 = vand.u32 %v177, 4294901760
    %198 = vmatpush.msra.mxu0 %v197
    %v199 = vand.u32 %v176, 4294901760
    %200 = vmatpush.msra.mxu0 %v199
    %v201 = vand.u32 %v175, 4294901760
    %202 = vmatpush.msra.mxu0 %v201
    %v203 = vand.u32 %v174, 4294901760
    %204 = vmatpush.msra.mxu0 %v203
    %v205 = vand.u32 %v183, 4294901760
    %v206 = vsub.f32 %v183, %v205
    %v207 = vand.u32 %v206, 4294901760
    %v208 = vsub.f32 %v206, %v207
    %v209 = vand.u32 %v208, 4294901760
    %210 = vmatmul.f32.gmra.mxu0 %v209
    %v211 = vpop.f32.mrf.mxu0
    %v212 = vadd.f32 %v180, %v211
    %213 = vdwg.mxu0
    %214 = vmatpush.msra.mxu0 0.0
    %215 = vmatpush.msra.mxu0 0.0
    %216 = vmatpush.msra.mxu0 0.0
    %217 = vmatpush.msra.mxu0 0.0
    %218 = vmatpush.msra.mxu0 0.0
    %219 = vmatpush.msra.mxu0 0.0
    %220 = vmatpush.msra.mxu0 0.0
    %221 = vmatpush.msra.mxu0 0.0
    %222 = vmatpush.msra.mxu0 0.0
    %223 = vmatpush.msra.mxu0 0.0
    %224 = vmatpush.msra.mxu0 0.0
    %225 = vmatpush.msra.mxu0 0.0
    %v226 = vand.u32 %v177, 4294901760
    %v227 = vsub.f32 %v177, %v226
    %v228 = vand.u32 %v227, 4294901760
    %v229 = vsub.f32 %v227, %v228
    %v230 = vand.u32 %v229, 4294901760
    %231 = vmatpush.msra.mxu0 %v230
    %v232 = vand.u32 %v176, 4294901760
    %v233 = vsub.f32 %v176, %v232
    %v234 = vand.u32 %v233, 4294901760
    %v235 = vsub.f32 %v233, %v234
    %v236 = vand.u32 %v235, 4294901760
    %237 = vmatpush.msra.mxu0 %v236
    %v238 = vand.u32 %v175, 4294901760
    %v239 = vsub.f32 %v175, %v238
    %v240 = vand.u32 %v239, 4294901760
    %v241 = vsub.f32 %v239, %v240
    %v242 = vand.u32 %v241, 4294901760
    %243 = vmatpush.msra.mxu0 %v242
    %v244 = vand.u32 %v174, 4294901760
    %v245 = vsub.f32 %v174, %v244
    %v246 = vand.u32 %v245, 4294901760
    %v247 = vsub.f32 %v245, %v246
    %v248 = vand.u32 %v247, 4294901760
    %249 = vmatpush.msra.mxu0 %v248
    %v250 = vand.u32 %v183, 4294901760
    %251 = vmatmul.f32.gmra.mxu0 %v250
    %v252 = vpop.f32.mrf.mxu0
    %v253 = vadd.f32 %v212, %v252
    %254 = vdwg.mxu0
    %255 = vmatpush.msra.mxu0 0.0
    %256 = vmatpush.msra.mxu0 0.0
    %257 = vmatpush.msra.mxu0 0.0
    %258 = vmatpush.msra.mxu0 0.0
    %259 = vmatpush.msra.mxu0 0.0
    %260 = vmatpush.msra.mxu0 0.0
    %261 = vmatpush.msra.mxu0 0.0
    %262 = vmatpush.msra.mxu0 0.0
    %263 = vmatpush.msra.mxu0 0.0
    %264 = vmatpush.msra.mxu0 0.0
    %265 = vmatpush.msra.mxu0 0.0
    %266 = vmatpush.msra.mxu0 0.0
    %v267 = vand.u32 %v177, 4294901760
    %v268 = vsub.f32 %v177, %v267
    %269 = vmatpush.msra.mxu0 %v268
    %v270 = vand.u32 %v176, 4294901760
    %v271 = vsub.f32 %v176, %v270
    %272 = vmatpush.msra.mxu0 %v271
    %v273 = vand.u32 %v175, 4294901760
    %v274 = vsub.f32 %v175, %v273
    %275 = vmatpush.msra.mxu0 %v274
    %v276 = vand.u32 %v174, 4294901760
    %v277 = vsub.f32 %v174, %v276
    %278 = vmatpush.msra.mxu0 %v277
    %v279 = vand.u32 %v183, 4294901760
    %v280 = vsub.f32 %v183, %v279
    %281 = vmatmul.f32.gmra.mxu0 %v280
    %v282 = vpop.f32.mrf.mxu0
    %v283 = vadd.f32 %v253, %v282
    %284 = vdwg.mxu0
    %285 = vmatpush.msra.mxu0 0.0
    %286 = vmatpush.msra.mxu0 0.0
    %287 = vmatpush.msra.mxu0 0.0
    %288 = vmatpush.msra.mxu0 0.0
    %289 = vmatpush.msra.mxu0 0.0
    %290 = vmatpush.msra.mxu0 0.0
    %291 = vmatpush.msra.mxu0 0.0
    %292 = vmatpush.msra.mxu0 0.0
    %293 = vmatpush.msra.mxu0 0.0
    %294 = vmatpush.msra.mxu0 0.0
    %295 = vmatpush.msra.mxu0 0.0
    %296 = vmatpush.msra.mxu0 0.0
    %v297 = vand.u32 %v177, 4294901760
    %298 = vmatpush.msra.mxu0 %v297
    %v299 = vand.u32 %v176, 4294901760
    %300 = vmatpush.msra.mxu0 %v299
    %v301 = vand.u32 %v175, 4294901760
    %302 = vmatpush.msra.mxu0 %v301
    %v303 = vand.u32 %v174, 4294901760
    %304 = vmatpush.msra.mxu0 %v303
    %v305 = vand.u32 %v183, 4294901760
    %v306 = vsub.f32 %v183, %v305
    %v307 = vand.u32 %v306, 4294901760
    %308 = vmatmul.f32.gmra.mxu0 %v307
    %v309 = vpop.f32.mrf.mxu0
    %v310 = vadd.f32 %v283, %v309
    %311 = vdwg.mxu0
    %312 = vmatpush.msra.mxu0 0.0
    %313 = vmatpush.msra.mxu0 0.0
    %314 = vmatpush.msra.mxu0 0.0
    %315 = vmatpush.msra.mxu0 0.0
    %316 = vmatpush.msra.mxu0 0.0
    %317 = vmatpush.msra.mxu0 0.0
    %318 = vmatpush.msra.mxu0 0.0
    %319 = vmatpush.msra.mxu0 0.0
    %320 = vmatpush.msra.mxu0 0.0
    %321 = vmatpush.msra.mxu0 0.0
    %322 = vmatpush.msra.mxu0 0.0
    %323 = vmatpush.msra.mxu0 0.0
    %v324 = vand.u32 %v177, 4294901760
    %v325 = vsub.f32 %v177, %v324
    %v326 = vand.u32 %v325, 4294901760
    %327 = vmatpush.msra.mxu0 %v326
    %v328 = vand.u32 %v176, 4294901760
    %v329 = vsub.f32 %v176, %v328
    %v330 = vand.u32 %v329, 4294901760
    %331 = vmatpush.msra.mxu0 %v330
    %v332 = vand.u32 %v175, 4294901760
    %v333 = vsub.f32 %v175, %v332
    %v334 = vand.u32 %v333, 4294901760
    %335 = vmatpush.msra.mxu0 %v334
    %v336 = vand.u32 %v174, 4294901760
    %v337 = vsub.f32 %v174, %v336
    %v338 = vand.u32 %v337, 4294901760
    %339 = vmatpush.msra.mxu0 %v338
    %v340 = vand.u32 %v183, 4294901760
    %341 = vmatmul.f32.gmra.mxu0 %v340
    %v342 = vpop.f32.mrf.mxu0
    %v343 = vadd.f32 %v310, %v342
    %344 = vdwg.mxu0
    %345 = vmatpush.msra.mxu0 0.0
    %346 = vmatpush.msra.mxu0 0.0
    %347 = vmatpush.msra.mxu0 0.0
    %348 = vmatpush.msra.mxu0 0.0
    %349 = vmatpush.msra.mxu0 0.0
    %350 = vmatpush.msra.mxu0 0.0
    %351 = vmatpush.msra.mxu0 0.0
    %352 = vmatpush.msra.mxu0 0.0
    %353 = vmatpush.msra.mxu0 0.0
    %354 = vmatpush.msra.mxu0 0.0
    %355 = vmatpush.msra.mxu0 0.0
    %356 = vmatpush.msra.mxu0 0.0
    %v357 = vand.u32 %v177, 4294901760
    %358 = vmatpush.msra.mxu0 %v357
    %v359 = vand.u32 %v176, 4294901760
    %360 = vmatpush.msra.mxu0 %v359
    %v361 = vand.u32 %v175, 4294901760
    %362 = vmatpush.msra.mxu0 %v361
    %v363 = vand.u32 %v174, 4294901760
    %364 = vmatpush.msra.mxu0 %v363
    %v365 = vand.u32 %v183, 4294901760
    %366 = vmatmul.f32.gmra.mxu0 %v365
    %v367 = vpop.f32.mrf.mxu0
    %v368 = vadd.f32 %v343, %v367
    %369 = vdwg.mxu0
    %370 = vst [vmem:[%s7] sm:$0xff] %v368
  $region37: #{text_sentiment_forward.1} parent=0 // pred_fallthru
    _
  // Predicated region
  $region38: #{text_sentiment_forward.1} parent=0 // pred_check
    _
  $region39: #{text_sentiment_forward.1} parent=0 // pred_check_branch
    %372 = sbr.rel (0) target = $region41
  $region40: #{text_sentiment_forward.1} parent=0 // pred_region
    _
  $region41: #{text_sentiment_forward.1} parent=0 // pred_fallthru
    _
  // Predicated region
  $region42: #{text_sentiment_forward.1} parent=0 // pred_check
    _
  $region43: #{text_sentiment_forward.1} parent=0 // pred_check_branch
    %374 = sbr.rel (0) target = $region45
  $region44: #{text_sentiment_forward.1} parent=0 // pred_region
    _
  $region45: #{text_sentiment_forward.1} parent=0 // pred_fallthru
    _

</llo_original>
